<compile_context>
chip_gen: v7x
topology: tpu7x:2x2x1
jax: 0.10.0
libtpu: 0.0.40
codegen_flags: <defaults>
</compile_context>

<pallas_src>
import functools

import jax
import jax.numpy as jnp
from jax import lax
from jax.experimental import pallas as pl
from jax.experimental.pallas import tpu as pltpu

LN_EPS = 1e-5


def _round_up(x, m):
    return ((x + m - 1) // m) * m


def _layernorm_1pass(h, gamma, beta, n_real, eps):
    # Single reduction pass: E[x] and E[x^2].  Padded feature columns of `h`
    # are guaranteed to be exactly zero, so summing over the padded width and
    # dividing by the *real* width reproduces the unpadded statistics.
    inv_n = jnp.float32(1.0 / n_real)
    mu = jnp.sum(h, axis=-1, keepdims=True) * inv_n
    ex2 = jnp.sum(h * h, axis=-1, keepdims=True) * inv_n
    var = ex2 - mu * mu
    return (h - mu) * lax.rsqrt(var + eps) * gamma + beta


def dynamics_kernel(x_ref,
                    w_in_ref, b_in_ref, g_in_ref, be_in_ref,
                    w_h_ref, b_h_ref, g_h_ref, be_h_ref,
                    w_out_ref, b_out_ref,
                    o_ref, *, n_real, eps):
    # bf16 operands on the MXU, f32 accumulation; LayerNorm / residual in f32.
    x = x_ref[...].astype(jnp.bfloat16)

    # input_layer: Linear -> LayerNorm -> ReLU
    h = jnp.dot(x, w_in_ref[...], preferred_element_type=jnp.float32) + b_in_ref[...]
    h = _layernorm_1pass(h, g_in_ref[...], be_in_ref[...], n_real, eps)
    h = jnp.maximum(h, 0.0)

    # residual hidden blocks: h = block(h) + h   (n_layers is static -> unrolled)
    n_layers = w_h_ref.shape[0]
    for l in range(n_layers):
        y = jnp.dot(h.astype(jnp.bfloat16), w_h_ref[l],
                    preferred_element_type=jnp.float32) + b_h_ref[l]
        y = _layernorm_1pass(y, g_h_ref[l], be_h_ref[l], n_real, eps)
        y = jnp.maximum(y, 0.0)
        h = h + y

    # output_layer: Linear
    out = jnp.dot(h.astype(jnp.bfloat16), w_out_ref[...],
                  preferred_element_type=jnp.float32) + b_out_ref[...]
    o_ref[...] = out.astype(o_ref.dtype)


def dynamics_net_forward(x, params, *, bm=256):
    """x: [B, input_dim] float32. params: dict of f32 weights (see init_params)."""
    B, input_dim = x.shape
    n_layers, n_neurons, _ = params["w_h"].shape
    output_dim = params["w_out"].shape[1]

    # Lane-dense padding of every feature axis to a multiple of 128.
    K = _round_up(input_dim, 128)
    N = _round_up(n_neurons, 128)
    O = _round_up(output_dim, 128)

    # Batch tile: as large as requested but no larger than the (8-aligned)
    # batch; pad the batch up to a multiple of the tile (handles any B).
    bm_eff = max(8, min(_round_up(bm, 8), _round_up(B, 8)))
    B_pad = _round_up(B, bm_eff)
    grid = (B_pad // bm_eff,)

    f32, bf16 = jnp.float32, jnp.bfloat16

    def pad2(a, rows, cols, dtype):
        out = jnp.zeros((rows, cols), dtype)
        return out.at[:a.shape[0], :a.shape[1]].set(a.astype(dtype))

    def pad3(a, d0, rows, cols, dtype):
        out = jnp.zeros((d0, rows, cols), dtype)
        return out.at[:, :a.shape[1], :a.shape[2]].set(a.astype(dtype))

    xp    = pad2(x, B_pad, K, f32)
    w_in  = pad2(params["w_in"], K, N, bf16)
    b_in  = pad2(params["b_in"], 1, N, f32)
    g_in  = pad2(params["g_in"], 1, N, f32)    # padded gamma/beta are zero
    be_in = pad2(params["be_in"], 1, N, f32)
    w_h   = pad3(params["w_h"], n_layers, N, N, bf16)
    b_h   = pad3(params["b_h"], n_layers, 1, N, f32)
    g_h   = pad3(params["g_h"], n_layers, 1, N, f32)
    be_h  = pad3(params["be_h"], n_layers, 1, N, f32)
    w_out = pad2(params["w_out"], N, O, bf16)
    b_out = pad2(params["b_out"], 1, O, f32)

    def full(shape):
        # whole-array block with a constant index_map -> resident across grid
        nd = len(shape)
        return pl.BlockSpec(shape, lambda i: (0,) * nd)

    # VMEM budget: resident params + double-buffered x/out tiles + live f32
    # activations; clamp under v7x's 64 MiB physical VMEM.
    param_bytes = sum(int(a.size) * a.dtype.itemsize
                      for a in (w_in, b_in, g_in, be_in, w_h, b_h, g_h, be_h,
                                w_out, b_out))
    act_bytes = bm_eff * (K + O) * 4 * 2          # double-buffered in/out tiles
    scratch_bytes = 8 * bm_eff * N * 4            # live f32 activations
    vmem_limit = 2 * param_bytes + act_bytes + scratch_bytes + (4 << 20)
    vmem_limit = int(min(max(vmem_limit, 8 << 20), 64 << 20))

    kernel = functools.partial(dynamics_kernel, n_real=n_neurons, eps=LN_EPS)

    out_padded = pl.pallas_call(
        kernel,
        out_shape=jax.ShapeDtypeStruct((B_pad, O), jnp.float32),
        grid_spec=pltpu.PrefetchScalarGridSpec(
            num_scalar_prefetch=0,
            grid=grid,
            in_specs=[
                pl.BlockSpec((bm_eff, K), lambda i: (i, 0)),        # x
                full(w_in.shape), full(b_in.shape),                  # input Linear
                full(g_in.shape), full(be_in.shape),                 # input LayerNorm
                full(w_h.shape), full(b_h.shape),                    # hidden Linears
                full(g_h.shape), full(be_h.shape),                   # hidden LayerNorms
                full(w_out.shape), full(b_out.shape),                # output Linear
            ],
            out_specs=pl.BlockSpec((bm_eff, O), lambda i: (i, 0)),
        ),
        compiler_params=pltpu.CompilerParams(
            dimension_semantics=("parallel",),
            vmem_limit_bytes=vmem_limit),
    )(xp, w_in, b_in, g_in, be_in, w_h, b_h, g_h, be_h, w_out, b_out)

    return out_padded[:B, :output_dim]


def init_params(key, input_dim, output_dim, n_neurons, n_layers):
    ks = jax.random.split(key, 4 + n_layers)
    scale = 0.1
    w_in = scale * jax.random.normal(ks[0], (input_dim, n_neurons), jnp.float32)
    b_in = scale * jax.random.normal(ks[1], (1, n_neurons), jnp.float32)
    # LayerNorm default init: gamma=1, beta=0
    g_in = jnp.ones((1, n_neurons), jnp.float32)
    be_in = jnp.zeros((1, n_neurons), jnp.float32)

    w_h = jnp.stack([scale * jax.random.normal(ks[4 + l], (n_neurons, n_neurons),
                                               jnp.float32)
                     for l in range(n_layers)])
    b_h = scale * jax.random.normal(ks[2], (n_layers, 1, n_neurons), jnp.float32)
    g_h = jnp.ones((n_layers, 1, n_neurons), jnp.float32)
    be_h = jnp.zeros((n_layers, 1, n_neurons), jnp.float32)

    w_out = scale * jax.random.normal(ks[3], (n_neurons, output_dim), jnp.float32)
    b_out = jnp.zeros((1, output_dim), jnp.float32)
    return dict(w_in=w_in, b_in=b_in, g_in=g_in, be_in=be_in,
                w_h=w_h, b_h=b_h, g_h=g_h, be_h=be_h,
                w_out=w_out, b_out=b_out)


def reference_forward(x, p):
    """Pure-JAX reference mirroring the kernel's bf16-matmul / f32-LN math."""
    def mm(a, w):
        return jnp.dot(a.astype(jnp.bfloat16), w.astype(jnp.bfloat16),
                       preferred_element_type=jnp.float32)

    def ln(h, g, b):
        mu = jnp.mean(h, axis=-1, keepdims=True)
        var = jnp.mean((h - mu) ** 2, axis=-1, keepdims=True)
        return (h - mu) * lax.rsqrt(var + LN_EPS) * g + b

    h = mm(x, p["w_in"]) + p["b_in"]
    h = jnp.maximum(ln(h, p["g_in"], p["be_in"]), 0.0)
    for l in range(p["w_h"].shape[0]):
        y = mm(h, p["w_h"][l]) + p["b_h"][l]
        y = jnp.maximum(ln(y, p["g_h"][l], p["be_h"][l]), 0.0)
        h = h + y
    return mm(h, p["w_out"]) + p["b_out"]


if __name__ == "__main__":
    # Small shapes consistent with the module: DynamicsNet(input_dim=11,
    # output_dim=5, n_neurons=32, n_layers=2, activation=nn.ReLU)
    B, input_dim, output_dim, n_neurons, n_layers = 16, 11, 5, 32, 2

    key = jax.random.PRNGKey(0)
    kx, kp = jax.random.split(key)
    x = jax.random.normal(kx, (B, input_dim), jnp.float32)
    params = init_params(kp, input_dim, output_dim, n_neurons, n_layers)

    out = dynamics_net_forward(x, params)
    out = jax.block_until_ready(out)

    ref = reference_forward(x, params)
    assert out.shape == (B, output_dim)
    assert jnp.allclose(out, ref, atol=5e-3, rtol=5e-3), "mismatch vs JAX reference"

    print("KERNEL_OK")
</pallas_src>

<mosaic_0001>
module attributes {stable_mosaic.version = 11 : i64} {
  func.func @dynamics_kernel(%arg0: i32, %arg1: memref<16x128xf32, #tpu.memory_space<vmem>>, %arg2: memref<128x128xbf16, #tpu.memory_space<vmem>>, %arg3: memref<1x128xf32, #tpu.memory_space<vmem>>, %arg4: memref<1x128xf32, #tpu.memory_space<vmem>>, %arg5: memref<1x128xf32, #tpu.memory_space<vmem>>, %arg6: memref<2x128x128xbf16, #tpu.memory_space<vmem>>, %arg7: memref<2x1x128xf32, #tpu.memory_space<vmem>>, %arg8: memref<2x1x128xf32, #tpu.memory_space<vmem>>, %arg9: memref<2x1x128xf32, #tpu.memory_space<vmem>>, %arg10: memref<128x128xbf16, #tpu.memory_space<vmem>>, %arg11: memref<1x128xf32, #tpu.memory_space<vmem>>, %arg12: memref<16x128xf32, #tpu.memory_space<vmem>>) attributes {dimension_semantics = [#tpu.dimension_semantics<parallel>], iteration_bounds = array<i64: 1>, scalar_prefetch = 0 : i64, scratch_operands = 0 : i64, tpu.core_type = #tpu.core_type<tc>, window_params = [{transform_indices = @transform_0, window_bounds = array<i64: 16, 128>}, {pipeline_mode = #tpu.pipeline_mode<synchronous>, transform_indices = @transform_1, window_bounds = array<i64: 128, 128>}, {pipeline_mode = #tpu.pipeline_mode<synchronous>, transform_indices = @transform_2, window_bounds = array<i64: 1, 128>}, {pipeline_mode = #tpu.pipeline_mode<synchronous>, transform_indices = @transform_3, window_bounds = array<i64: 1, 128>}, {pipeline_mode = #tpu.pipeline_mode<synchronous>, transform_indices = @transform_4, window_bounds = array<i64: 1, 128>}, {pipeline_mode = #tpu.pipeline_mode<synchronous>, transform_indices = @transform_5, window_bounds = array<i64: 2, 128, 128>}, {pipeline_mode = #tpu.pipeline_mode<synchronous>, transform_indices = @transform_6, window_bounds = array<i64: 2, 1, 128>}, {pipeline_mode = #tpu.pipeline_mode<synchronous>, transform_indices = @transform_7, window_bounds = array<i64: 2, 1, 128>}, {pipeline_mode = #tpu.pipeline_mode<synchronous>, transform_indices = @transform_8, window_bounds = array<i64: 2, 1, 128>}, {pipeline_mode = #tpu.pipeline_mode<synchronous>, transform_indices = @transform_9, window_bounds = array<i64: 128, 128>}, {pipeline_mode = #tpu.pipeline_mode<synchronous>, transform_indices = @transform_10, window_bounds = array<i64: 1, 128>}, {transform_indices = @transform_11, window_bounds = array<i64: 16, 128>}]} {
    %c0 = arith.constant 0 : index
    %c0_0 = arith.constant 0 : index
    %0 = vector.load %arg1[%c0, %c0_0] : memref<16x128xf32, #tpu.memory_space<vmem>>, vector<16x128xf32>
    %1 = arith.truncf %0 : vector<16x128xf32> to vector<16x128xbf16>
    %c0_1 = arith.constant 0 : index
    %c0_2 = arith.constant 0 : index
    %2 = vector.load %arg2[%c0_1, %c0_2] : memref<128x128xbf16, #tpu.memory_space<vmem>>, vector<128x128xbf16>
    %cst = arith.constant dense<0.000000e+00> : vector<16x128xf32>
    %3 = tpu.matmul %1, %2, %cst {dimension_numbers = #tpu.dot_dimension_numbers<[1], [0], [0], [1], [0, 0, 1, 1], [], []>} : vector<16x128xbf16>, vector<128x128xbf16>, vector<16x128xf32> -> vector<16x128xf32>
    %c0_3 = arith.constant 0 : index
    %c0_4 = arith.constant 0 : index
    %4 = vector.load %arg3[%c0_3, %c0_4] : memref<1x128xf32, #tpu.memory_space<vmem>>, vector<1x128xf32>
    %5 = vector.broadcast %4 : vector<1x128xf32> to vector<16x128xf32>
    %6 = arith.addf %3, %5 : vector<16x128xf32>
    %c0_5 = arith.constant 0 : index
    %c0_6 = arith.constant 0 : index
    %7 = vector.load %arg4[%c0_5, %c0_6] : memref<1x128xf32, #tpu.memory_space<vmem>>, vector<1x128xf32>
    %c0_7 = arith.constant 0 : index
    %c0_8 = arith.constant 0 : index
    %8 = vector.load %arg5[%c0_7, %c0_8] : memref<1x128xf32, #tpu.memory_space<vmem>>, vector<1x128xf32>
    %cst_9 = arith.constant dense<0.000000e+00> : vector<16xf32>
    %9 = vector.multi_reduction <add>, %6, %cst_9 [1] : vector<16x128xf32> to vector<16xf32>
    %10 = vector.shape_cast %9 : vector<16xf32> to vector<16x1xf32>
    %cst_10 = arith.constant 3.125000e-02 : f32
    %11 = vector.broadcast %cst_10 : f32 to vector<16x1xf32>
    %12 = arith.mulf %10, %11 : vector<16x1xf32>
    %13 = arith.mulf %6, %6 : vector<16x128xf32>
    %cst_11 = arith.constant dense<0.000000e+00> : vector<16xf32>
    %14 = vector.multi_reduction <add>, %13, %cst_11 [1] : vector<16x128xf32> to vector<16xf32>
    %15 = vector.shape_cast %14 : vector<16xf32> to vector<16x1xf32>
    %cst_12 = arith.constant 3.125000e-02 : f32
    %16 = vector.broadcast %cst_12 : f32 to vector<16x1xf32>
    %17 = arith.mulf %15, %16 : vector<16x1xf32>
    %18 = arith.mulf %12, %12 : vector<16x1xf32>
    %19 = arith.subf %17, %18 : vector<16x1xf32>
    %20 = vector.broadcast %12 : vector<16x1xf32> to vector<16x128xf32>
    %21 = arith.subf %6, %20 : vector<16x128xf32>
    %cst_13 = arith.constant 9.99999974E-6 : f32
    %22 = vector.broadcast %cst_13 : f32 to vector<16x1xf32>
    %23 = arith.addf %19, %22 : vector<16x1xf32>
    %24 = math.rsqrt %23 : vector<16x1xf32>
    %25 = vector.broadcast %24 : vector<16x1xf32> to vector<16x128xf32>
    %26 = arith.mulf %21, %25 : vector<16x128xf32>
    %27 = vector.broadcast %7 : vector<1x128xf32> to vector<16x128xf32>
    %28 = arith.mulf %26, %27 : vector<16x128xf32>
    %29 = vector.broadcast %8 : vector<1x128xf32> to vector<16x128xf32>
    %30 = arith.addf %28, %29 : vector<16x128xf32>
    %cst_14 = arith.constant 0.000000e+00 : f32
    %31 = vector.broadcast %cst_14 : f32 to vector<16x128xf32>
    %32 = arith.maximumf %30, %31 : vector<16x128xf32>
    %33 = arith.truncf %32 : vector<16x128xf32> to vector<16x128xbf16>
    %c0_15 = arith.constant 0 : index
    %c0_16 = arith.constant 0 : index
    %c0_17 = arith.constant 0 : index
    %34 = vector.load %arg6[%c0_15, %c0_16, %c0_17] : memref<2x128x128xbf16, #tpu.memory_space<vmem>>, vector<1x128x128xbf16>
    %35 = vector.shape_cast %34 : vector<1x128x128xbf16> to vector<128x128xbf16>
    %cst_18 = arith.constant dense<0.000000e+00> : vector<16x128xf32>
    %36 = tpu.matmul %33, %35, %cst_18 {dimension_numbers = #tpu.dot_dimension_numbers<[1], [0], [0], [1], [0, 0, 1, 1], [], []>} : vector<16x128xbf16>, vector<128x128xbf16>, vector<16x128xf32> -> vector<16x128xf32>
    %c0_19 = arith.constant 0 : index
    %c0_20 = arith.constant 0 : index
    %c0_21 = arith.constant 0 : index
    %37 = vector.load %arg7[%c0_19, %c0_20, %c0_21] : memref<2x1x128xf32, #tpu.memory_space<vmem>>, vector<1x1x128xf32>
    %38 = vector.shape_cast %37 : vector<1x1x128xf32> to vector<1x128xf32>
    %39 = vector.broadcast %38 : vector<1x128xf32> to vector<16x128xf32>
    %40 = arith.addf %36, %39 : vector<16x128xf32>
    %c0_22 = arith.constant 0 : index
    %c0_23 = arith.constant 0 : index
    %c0_24 = arith.constant 0 : index
    %41 = vector.load %arg8[%c0_22, %c0_23, %c0_24] : memref<2x1x128xf32, #tpu.memory_space<vmem>>, vector<1x1x128xf32>
    %42 = vector.shape_cast %41 : vector<1x1x128xf32> to vector<1x128xf32>
    %c0_25 = arith.constant 0 : index
    %c0_26 = arith.constant 0 : index
    %c0_27 = arith.constant 0 : index
    %43 = vector.load %arg9[%c0_25, %c0_26, %c0_27] : memref<2x1x128xf32, #tpu.memory_space<vmem>>, vector<1x1x128xf32>
    %44 = vector.shape_cast %43 : vector<1x1x128xf32> to vector<1x128xf32>
    %cst_28 = arith.constant dense<0.000000e+00> : vector<16xf32>
    %45 = vector.multi_reduction <add>, %40, %cst_28 [1] : vector<16x128xf32> to vector<16xf32>
    %46 = vector.shape_cast %45 : vector<16xf32> to vector<16x1xf32>
    %cst_29 = arith.constant 3.125000e-02 : f32
    %47 = vector.broadcast %cst_29 : f32 to vector<16x1xf32>
    %48 = arith.mulf %46, %47 : vector<16x1xf32>
    %49 = arith.mulf %40, %40 : vector<16x128xf32>
    %cst_30 = arith.constant dense<0.000000e+00> : vector<16xf32>
    %50 = vector.multi_reduction <add>, %49, %cst_30 [1] : vector<16x128xf32> to vector<16xf32>
    %51 = vector.shape_cast %50 : vector<16xf32> to vector<16x1xf32>
    %cst_31 = arith.constant 3.125000e-02 : f32
    %52 = vector.broadcast %cst_31 : f32 to vector<16x1xf32>
    %53 = arith.mulf %51, %52 : vector<16x1xf32>
    %54 = arith.mulf %48, %48 : vector<16x1xf32>
    %55 = arith.subf %53, %54 : vector<16x1xf32>
    %56 = vector.broadcast %48 : vector<16x1xf32> to vector<16x128xf32>
    %57 = arith.subf %40, %56 : vector<16x128xf32>
    %cst_32 = arith.constant 9.99999974E-6 : f32
    %58 = vector.broadcast %cst_32 : f32 to vector<16x1xf32>
    %59 = arith.addf %55, %58 : vector<16x1xf32>
    %60 = math.rsqrt %59 : vector<16x1xf32>
    %61 = vector.broadcast %60 : vector<16x1xf32> to vector<16x128xf32>
    %62 = arith.mulf %57, %61 : vector<16x128xf32>
    %63 = vector.broadcast %42 : vector<1x128xf32> to vector<16x128xf32>
    %64 = arith.mulf %62, %63 : vector<16x128xf32>
    %65 = vector.broadcast %44 : vector<1x128xf32> to vector<16x128xf32>
    %66 = arith.addf %64, %65 : vector<16x128xf32>
    %cst_33 = arith.constant 0.000000e+00 : f32
    %67 = vector.broadcast %cst_33 : f32 to vector<16x128xf32>
    %68 = arith.maximumf %66, %67 : vector<16x128xf32>
    %69 = arith.addf %32, %68 : vector<16x128xf32>
    %70 = arith.truncf %69 : vector<16x128xf32> to vector<16x128xbf16>
    %c1 = arith.constant 1 : index
    %c0_34 = arith.constant 0 : index
    %c0_35 = arith.constant 0 : index
    %71 = vector.load %arg6[%c1, %c0_34, %c0_35] : memref<2x128x128xbf16, #tpu.memory_space<vmem>>, vector<1x128x128xbf16>
    %72 = vector.shape_cast %71 : vector<1x128x128xbf16> to vector<128x128xbf16>
    %cst_36 = arith.constant dense<0.000000e+00> : vector<16x128xf32>
    %73 = tpu.matmul %70, %72, %cst_36 {dimension_numbers = #tpu.dot_dimension_numbers<[1], [0], [0], [1], [0, 0, 1, 1], [], []>} : vector<16x128xbf16>, vector<128x128xbf16>, vector<16x128xf32> -> vector<16x128xf32>
    %c1_37 = arith.constant 1 : index
    %c0_38 = arith.constant 0 : index
    %c0_39 = arith.constant 0 : index
    %74 = vector.load %arg7[%c1_37, %c0_38, %c0_39] : memref<2x1x128xf32, #tpu.memory_space<vmem>>, vector<1x1x128xf32>
    %75 = vector.shape_cast %74 : vector<1x1x128xf32> to vector<1x128xf32>
    %76 = vector.broadcast %75 : vector<1x128xf32> to vector<16x128xf32>
    %77 = arith.addf %73, %76 : vector<16x128xf32>
    %c1_40 = arith.constant 1 : index
    %c0_41 = arith.constant 0 : index
    %c0_42 = arith.constant 0 : index
    %78 = vector.load %arg8[%c1_40, %c0_41, %c0_42] : memref<2x1x128xf32, #tpu.memory_space<vmem>>, vector<1x1x128xf32>
    %79 = vector.shape_cast %78 : vector<1x1x128xf32> to vector<1x128xf32>
    %c1_43 = arith.constant 1 : index
    %c0_44 = arith.constant 0 : index
    %c0_45 = arith.constant 0 : index
    %80 = vector.load %arg9[%c1_43, %c0_44, %c0_45] : memref<2x1x128xf32, #tpu.memory_space<vmem>>, vector<1x1x128xf32>
    %81 = vector.shape_cast %80 : vector<1x1x128xf32> to vector<1x128xf32>
    %cst_46 = arith.constant dense<0.000000e+00> : vector<16xf32>
    %82 = vector.multi_reduction <add>, %77, %cst_46 [1] : vector<16x128xf32> to vector<16xf32>
    %83 = vector.shape_cast %82 : vector<16xf32> to vector<16x1xf32>
    %cst_47 = arith.constant 3.125000e-02 : f32
    %84 = vector.broadcast %cst_47 : f32 to vector<16x1xf32>
    %85 = arith.mulf %83, %84 : vector<16x1xf32>
    %86 = arith.mulf %77, %77 : vector<16x128xf32>
    %cst_48 = arith.constant dense<0.000000e+00> : vector<16xf32>
    %87 = vector.multi_reduction <add>, %86, %cst_48 [1] : vector<16x128xf32> to vector<16xf32>
    %88 = vector.shape_cast %87 : vector<16xf32> to vector<16x1xf32>
    %cst_49 = arith.constant 3.125000e-02 : f32
    %89 = vector.broadcast %cst_49 : f32 to vector<16x1xf32>
    %90 = arith.mulf %88, %89 : vector<16x1xf32>
    %91 = arith.mulf %85, %85 : vector<16x1xf32>
    %92 = arith.subf %90, %91 : vector<16x1xf32>
    %93 = vector.broadcast %85 : vector<16x1xf32> to vector<16x128xf32>
    %94 = arith.subf %77, %93 : vector<16x128xf32>
    %cst_50 = arith.constant 9.99999974E-6 : f32
    %95 = vector.broadcast %cst_50 : f32 to vector<16x1xf32>
    %96 = arith.addf %92, %95 : vector<16x1xf32>
    %97 = math.rsqrt %96 : vector<16x1xf32>
    %98 = vector.broadcast %97 : vector<16x1xf32> to vector<16x128xf32>
    %99 = arith.mulf %94, %98 : vector<16x128xf32>
    %100 = vector.broadcast %79 : vector<1x128xf32> to vector<16x128xf32>
    %101 = arith.mulf %99, %100 : vector<16x128xf32>
    %102 = vector.broadcast %81 : vector<1x128xf32> to vector<16x128xf32>
    %103 = arith.addf %101, %102 : vector<16x128xf32>
    %cst_51 = arith.constant 0.000000e+00 : f32
    %104 = vector.broadcast %cst_51 : f32 to vector<16x128xf32>
    %105 = arith.maximumf %103, %104 : vector<16x128xf32>
    %106 = arith.addf %69, %105 : vector<16x128xf32>
    %107 = arith.truncf %106 : vector<16x128xf32> to vector<16x128xbf16>
    %c0_52 = arith.constant 0 : index
    %c0_53 = arith.constant 0 : index
    %108 = vector.load %arg10[%c0_52, %c0_53] : memref<128x128xbf16, #tpu.memory_space<vmem>>, vector<128x128xbf16>
    %cst_54 = arith.constant dense<0.000000e+00> : vector<16x128xf32>
    %109 = tpu.matmul %107, %108, %cst_54 {dimension_numbers = #tpu.dot_dimension_numbers<[1], [0], [0], [1], [0, 0, 1, 1], [], []>} : vector<16x128xbf16>, vector<128x128xbf16>, vector<16x128xf32> -> vector<16x128xf32>
    %c0_55 = arith.constant 0 : index
    %c0_56 = arith.constant 0 : index
    %110 = vector.load %arg11[%c0_55, %c0_56] : memref<1x128xf32, #tpu.memory_space<vmem>>, vector<1x128xf32>
    %111 = vector.broadcast %110 : vector<1x128xf32> to vector<16x128xf32>
    %112 = arith.addf %109, %111 : vector<16x128xf32>
    %c0_57 = arith.constant 0 : index
    %c0_58 = arith.constant 0 : index
    %113 = vector.load %arg12[%c0_57, %c0_58] : memref<16x128xf32, #tpu.memory_space<vmem>>, vector<16x128xf32>
    tpu.vector_store %arg12[%c0_57, %c0_58], %112 {strides = array<i32>} : memref<16x128xf32, #tpu.memory_space<vmem>>, vector<16x128xf32>,
    return
  }
  func.func @transform_0(%arg0: i32) -> (i32, i32) {
    %c0_i32 = arith.constant 0 : i32
    %c0_i32_0 = arith.constant 0 : i32
    return %arg0, %c0_i32 : i32, i32
  }
  func.func @transform_1(%arg0: i32) -> (i32, i32) {
    %c0_i32 = arith.constant 0 : i32
    %c0_i32_0 = arith.constant 0 : i32
    %c0_i32_1 = arith.constant 0 : i32
    return %c0_i32, %c0_i32_0 : i32, i32
  }
  func.func @transform_2(%arg0: i32) -> (i32, i32) {
    %c0_i32 = arith.constant 0 : i32
    %c0_i32_0 = arith.constant 0 : i32
    %c0_i32_1 = arith.constant 0 : i32
    return %c0_i32, %c0_i32_0 : i32, i32
  }
  func.func @transform_3(%arg0: i32) -> (i32, i32) {
    %c0_i32 = arith.constant 0 : i32
    %c0_i32_0 = arith.constant 0 : i32
    %c0_i32_1 = arith.constant 0 : i32
    return %c0_i32, %c0_i32_0 : i32, i32
  }
  func.func @transform_4(%arg0: i32) -> (i32, i32) {
    %c0_i32 = arith.constant 0 : i32
    %c0_i32_0 = arith.constant 0 : i32
    %c0_i32_1 = arith.constant 0 : i32
    return %c0_i32, %c0_i32_0 : i32, i32
  }
  func.func @transform_5(%arg0: i32) -> (i32, i32, i32) {
    %c0_i32 = arith.constant 0 : i32
    %c0_i32_0 = arith.constant 0 : i32
    %c0_i32_1 = arith.constant 0 : i32
    %c0_i32_2 = arith.constant 0 : i32
    return %c0_i32, %c0_i32_0, %c0_i32_1 : i32, i32, i32
  }
  func.func @transform_6(%arg0: i32) -> (i32, i32, i32) {
    %c0_i32 = arith.constant 0 : i32
    %c0_i32_0 = arith.constant 0 : i32
    %c0_i32_1 = arith.constant 0 : i32
    %c0_i32_2 = arith.constant 0 : i32
    return %c0_i32, %c0_i32_0, %c0_i32_1 : i32, i32, i32
  }
  func.func @transform_7(%arg0: i32) -> (i32, i32, i32) {
    %c0_i32 = arith.constant 0 : i32
    %c0_i32_0 = arith.constant 0 : i32
    %c0_i32_1 = arith.constant 0 : i32
    %c0_i32_2 = arith.constant 0 : i32
    return %c0_i32, %c0_i32_0, %c0_i32_1 : i32, i32, i32
  }
  func.func @transform_8(%arg0: i32) -> (i32, i32, i32) {
    %c0_i32 = arith.constant 0 : i32
    %c0_i32_0 = arith.constant 0 : i32
    %c0_i32_1 = arith.constant 0 : i32
    %c0_i32_2 = arith.constant 0 : i32
    return %c0_i32, %c0_i32_0, %c0_i32_1 : i32, i32, i32
  }
  func.func @transform_9(%arg0: i32) -> (i32, i32) {
    %c0_i32 = arith.constant 0 : i32
    %c0_i32_0 = arith.constant 0 : i32
    %c0_i32_1 = arith.constant 0 : i32
    return %c0_i32, %c0_i32_0 : i32, i32
  }
  func.func @transform_10(%arg0: i32) -> (i32, i32) {
    %c0_i32 = arith.constant 0 : i32
    %c0_i32_0 = arith.constant 0 : i32
    %c0_i32_1 = arith.constant 0 : i32
    return %c0_i32, %c0_i32_0 : i32, i32
  }
  func.func @transform_11(%arg0: i32) -> (i32, i32) {
    %c0_i32 = arith.constant 0 : i32
    %c0_i32_0 = arith.constant 0 : i32
    return %arg0, %c0_i32 : i32, i32
  }
}

</mosaic_0001>

<llo_original>
// kernel: tpu_custom_call.1
$region0: #{tpu_custom_call.1}
  #allocation0 [shape = 'u32[]', space=smem, size = 0x4, offset = 0x4, fixed_abs, tag = 'smem constant byte address 0x4 - core index']
  #allocation1 [shape = 'u32[144,128]{1,0:T(1,128)}', space=vmem, size = 0x12000, scoped, tag = 'internal scratch']
  %s0 = inlined_call_operand.hbm [shape: f32[16,128], index: 0, kind: input, shape index: {}]
  %s1 = inlined_call_operand.hbm [shape: bf16[128,128], index: 1, kind: input, shape index: {}]
  %s2 = inlined_call_operand.vmem [shape: f32[1,128], index: 2, kind: input, shape index: {}]
  %s3 = inlined_call_operand.vmem [shape: f32[1,128], index: 3, kind: input, shape index: {}]
  %s4 = inlined_call_operand.vmem [shape: f32[1,128], index: 4, kind: input, shape index: {}]
  %s5 = inlined_call_operand.hbm [shape: bf16[2,128,128], index: 5, kind: input, shape index: {}]
  %s6 = inlined_call_operand.vmem [shape: f32[2,1,128], index: 6, kind: input, shape index: {}]
  %s7 = inlined_call_operand.vmem [shape: f32[2,1,128], index: 7, kind: input, shape index: {}]
  %s8 = inlined_call_operand.vmem [shape: f32[2,1,128], index: 8, kind: input, shape index: {}]
  %s9 = inlined_call_operand.hbm [shape: bf16[128,128], index: 9, kind: input, shape index: {}]
  %s10 = inlined_call_operand.vmem [shape: f32[1,128], index: 10, kind: input, shape index: {}]
  %s11 = inlined_call_operand.hbm [shape: f32[16,128], index: 11, kind: output, shape index: {}]
  %s12 = sld [smem:[#allocation0]]
  $region70: #{tpu_custom_call.1} parent=0
    _
  %s14 = ssub.s32 1, %s12
  %s15 = scalar_select 0, %s14, %s12
  $region1: #{tpu_custom_call.1} parent=0
    #allocation2 [shape = 'u8[8192]{0}', space=vmem, size = 0x2000, scoped, tag = 'input window, operand 0, single buffered']
    #allocation3 [shape = 's32[1]{0}', space=sflag, size = 0x4, scoped, tag = 'scoped memory for tpu_custom_call.1']
    #allocation4 [shape = 's32[1]{0}', space=sflag, size = 0x4, scoped, tag = 'scoped memory for tpu_custom_call.1']
    #allocation5 [shape = 'u8[32768]{0}', space=vmem, size = 0x8000, scoped, tag = 'input window, operand 1, single buffered']
    #allocation6 [shape = 's32[1]{0}', space=sflag, size = 0x4, scoped, tag = 'scoped memory for tpu_custom_call.1']
    #allocation7 [shape = 'u8[65536]{0}', space=vmem, size = 0x10000, scoped, tag = 'input window, operand 5, single buffered']
    #allocation8 [shape = 'u8[32768]{0}', space=vmem, size = 0x8000, scoped, tag = 'input window, operand 9, single buffered']
    #allocation9 [shape = 's32[1]{0}', space=sflag, size = 0x4, scoped, tag = 'scoped memory for tpu_custom_call.1']
    #allocation10 [shape = 'u8[8192]{0}', space=vmem, size = 0x2000, scoped, tag = 'output window, operand 0, single buffered']
    %16 = vsyncpa [#allocation3], 0
    %17 = vsyncpa [#allocation6], 0
    %18 = vsyncpa [#allocation9], 0
    %19 = vsyncpa [#allocation4], 0
    // Predicated region
    $region2: #{tpu_custom_call.1} parent=1 // pred_check
      _
    $region3: #{tpu_custom_call.1} parent=1 // pred_check_branch
      %21 = sbr.rel (0) target = $region5
    $region4: #{tpu_custom_call.1} parent=1 // pred_region
      %s23 = ssub.s32 256, 256
      %24 = vsyncadd [#allocation3], %s23
      %s25 = sshll.u32 [#allocation2], 4
      %s26 = int_to_ptr.vmem [resolvable:$true] %s25
      %31 = dma.hbm_to_vmem [thread:$0]  %s0, 256, %s26, [#allocation3], 128, 128, 8
    $region5: #{tpu_custom_call.1} parent=1 // pred_fallthru
      _
    // Predicated region
    $region6: #{tpu_custom_call.1} parent=1 // pred_check
      _
    $region7: #{tpu_custom_call.1} parent=1 // pred_check_branch
      %33 = sbr.rel (0) target = $region9
    $region8: #{tpu_custom_call.1} parent=1 // pred_region
      %s35 = ssub.s32 1024, 1024
      %36 = vsyncadd [#allocation6], %s35
      %s37 = sshll.u32 [#allocation5], 4
      %s38 = int_to_ptr.vmem [resolvable:$true] %s37
      %43 = dma.hbm_to_vmem [thread:$0]  %s1, 1024, %s38, [#allocation6], 64, 64, 4
    $region9: #{tpu_custom_call.1} parent=1 // pred_fallthru
      _
    // Predicated region
    $region10: #{tpu_custom_call.1} parent=1 // pred_check
      _
    $region11: #{tpu_custom_call.1} parent=1 // pred_check_branch
      %45 = sbr.rel (0) target = $region13
    $region12: #{tpu_custom_call.1} parent=1 // pred_region
      _
    $region13: #{tpu_custom_call.1} parent=1 // pred_fallthru
      _
    // Predicated region
    $region14: #{tpu_custom_call.1} parent=1 // pred_check
      _
    $region15: #{tpu_custom_call.1} parent=1 // pred_check_branch
      %47 = sbr.rel (0) target = $region17
    $region16: #{tpu_custom_call.1} parent=1 // pred_region
      _
    $region17: #{tpu_custom_call.1} parent=1 // pred_fallthru
      _
    // Predicated region
    $region18: #{tpu_custom_call.1} parent=1 // pred_check
      _
    $region19: #{tpu_custom_call.1} parent=1 // pred_check_branch
      %49 = sbr.rel (0) target = $region21
    $region20: #{tpu_custom_call.1} parent=1 // pred_region
      _
    $region21: #{tpu_custom_call.1} parent=1 // pred_fallthru
      _
    // Predicated region
    $region22: #{tpu_custom_call.1} parent=1 // pred_check
      _
    $region23: #{tpu_custom_call.1} parent=1 // pred_check_branch
      %51 = sbr.rel (0) target = $region25
    $region24: #{tpu_custom_call.1} parent=1 // pred_region
      %s53 = ssub.s32 2048, 2048
      %54 = vsyncadd [#allocation6], %s53
      %s55 = sshll.u32 [#allocation7], 4
      %s56 = int_to_ptr.vmem [resolvable:$true] %s55
      %61 = dma.hbm_to_vmem [thread:$0]  %s5, 2048, %s56, [#allocation6], 64, 64, 4
    $region25: #{tpu_custom_call.1} parent=1 // pred_fallthru
      _
    // Predicated region
    $region26: #{tpu_custom_call.1} parent=1 // pred_check
      _
    $region27: #{tpu_custom_call.1} parent=1 // pred_check_branch
      %63 = sbr.rel (0) target = $region29
    $region28: #{tpu_custom_call.1} parent=1 // pred_region
      _
    $region29: #{tpu_custom_call.1} parent=1 // pred_fallthru
      _
    // Predicated region
    $region30: #{tpu_custom_call.1} parent=1 // pred_check
      _
    $region31: #{tpu_custom_call.1} parent=1 // pred_check_branch
      %65 = sbr.rel (0) target = $region33
    $region32: #{tpu_custom_call.1} parent=1 // pred_region
      _
    $region33: #{tpu_custom_call.1} parent=1 // pred_fallthru
      _
    // Predicated region
    $region34: #{tpu_custom_call.1} parent=1 // pred_check
      _
    $region35: #{tpu_custom_call.1} parent=1 // pred_check_branch
      %67 = sbr.rel (0) target = $region37
    $region36: #{tpu_custom_call.1} parent=1 // pred_region
      _
    $region37: #{tpu_custom_call.1} parent=1 // pred_fallthru
      _
    // Predicated region
    $region38: #{tpu_custom_call.1} parent=1 // pred_check
      _
    $region39: #{tpu_custom_call.1} parent=1 // pred_check_branch
      %69 = sbr.rel (0) target = $region41
    $region40: #{tpu_custom_call.1} parent=1 // pred_region
      %s71 = ssub.s32 1024, 1024
      %72 = vsyncadd [#allocation9], %s71
      %s73 = sshll.u32 [#allocation8], 4
      %s74 = int_to_ptr.vmem [resolvable:$true] %s73
      %79 = dma.hbm_to_vmem [thread:$0]  %s9, 1024, %s74, [#allocation9], 64, 64, 4
    $region41: #{tpu_custom_call.1} parent=1 // pred_fallthru
      _
    // Predicated region
    $region42: #{tpu_custom_call.1} parent=1 // pred_check
      _
    $region43: #{tpu_custom_call.1} parent=1 // pred_check_branch
      %81 = sbr.rel (0) target = $region45
    $region44: #{tpu_custom_call.1} parent=1 // pred_region
      _
    $region45: #{tpu_custom_call.1} parent=1 // pred_fallthru
      _
    // Predicated region
    $region46: #{tpu_custom_call.1} parent=1 // pred_check
      _
    $region47: #{tpu_custom_call.1} parent=1 // pred_check_branch
      %83 = sbr.rel (0) target = $region49
    $region48: #{tpu_custom_call.1} parent=1 // pred_region
      %84 = dma.done [#allocation3], 256
    $region49: #{tpu_custom_call.1} parent=1 // pred_fallthru
      _
    // Predicated region
    $region50: #{tpu_custom_call.1} parent=1 // pred_check
      _
    $region51: #{tpu_custom_call.1} parent=1 // pred_check_branch
      %86 = sbr.rel (0) target = $region53
    $region52: #{tpu_custom_call.1} parent=1 // pred_region
      %87 = dma.done [#allocation6], 1024
    $region53: #{tpu_custom_call.1} parent=1 // pred_fallthru
      _
    // Predicated region
    $region54: #{tpu_custom_call.1} parent=1 // pred_check
      _
    $region55: #{tpu_custom_call.1} parent=1 // pred_check_branch
      %89 = sbr.rel (0) target = $region57
    $region56: #{tpu_custom_call.1} parent=1 // pred_region
      %90 = dma.done [#allocation6], 2048
    $region57: #{tpu_custom_call.1} parent=1 // pred_fallthru
      _
    // Predicated region
    $region58: #{tpu_custom_call.1} parent=1 // pred_check
      _
    $region59: #{tpu_custom_call.1} parent=1 // pred_check_branch
      %92 = sbr.rel (0) target = $region61
    $region60: #{tpu_custom_call.1} parent=1 // pred_region
      %93 = dma.done [#allocation9], 1024
    $region61: #{tpu_custom_call.1} parent=1 // pred_fallthru
      _
    %v95 = vld [vmem:[#allocation2] sm:$0xff]
    %v96 = vld [vmem:[#allocation2 + $0x8] sm:$0xff]
    %v97 = vpack.c.bf16 %v96, %v95
    %v98 = vld [vmem:[#allocation5] sm:$0xf]
    %v99 = vld [vmem:[#allocation5 + $0x4] sm:$0xf]
    %v100 = vld [vmem:[#allocation5 + $0x8] sm:$0xf]
    %v101 = vld [vmem:[#allocation5 + $0xc] sm:$0xf]
    %v102 = vld [vmem:[#allocation5 + $0x10] sm:$0xf]
    %v103 = vld [vmem:[#allocation5 + $0x14] sm:$0xf]
    %v104 = vld [vmem:[#allocation5 + $0x18] sm:$0xf]
    %v105 = vld [vmem:[#allocation5 + $0x1c] sm:$0xf]
    %v106 = vld [vmem:[#allocation5 + $0x20] sm:$0xf]
    %v107 = vld [vmem:[#allocation5 + $0x24] sm:$0xf]
    %v108 = vld [vmem:[#allocation5 + $0x28] sm:$0xf]
    %v109 = vld [vmem:[#allocation5 + $0x2c] sm:$0xf]
    %v110 = vld [vmem:[#allocation5 + $0x30] sm:$0xf]
    %v111 = vld [vmem:[#allocation5 + $0x34] sm:$0xf]
    %v112 = vld [vmem:[#allocation5 + $0x38] sm:$0xf]
    %v113 = vld [vmem:[#allocation5 + $0x3c] sm:$0xf]
    %v114 = vld [vmem:[%s2] sm:$0x1]
    %v116 = vlaneseq
    %v117 = vshrl.u32 %v116, 7
    %v118 = vsub.s32 0, %v117
    %v119 = vrot.slane %v114, %v118
    %v137 = vunpack.c.l.b16 %v98
    %v138 = vunpack.c.l.b16 %v99
    %v139 = vunpack.c.l.b16 %v100
    %v140 = vunpack.c.l.b16 %v101
    %v141 = vunpack.c.l.b16 %v102
    %v142 = vunpack.c.l.b16 %v103
    %v143 = vunpack.c.l.b16 %v104
    %v144 = vunpack.c.l.b16 %v105
    %v145 = vunpack.c.l.b16 %v106
    %v146 = vunpack.c.l.b16 %v107
    %v147 = vunpack.c.l.b16 %v108
    %v148 = vunpack.c.l.b16 %v109
    %v149 = vunpack.c.l.b16 %v110
    %v150 = vunpack.c.l.b16 %v111
    %v151 = vunpack.c.l.b16 %v112
    %v152 = vunpack.c.l.b16 %v113
    %v153 = vpack.c.b16 %v138, %v137
    %v154 = vpack.c.b16 %v140, %v139
    %v155 = vpack.c.b16 %v142, %v141
    %v156 = vpack.c.b16 %v144, %v143
    %v157 = vpack.c.b16 %v146, %v145
    %v158 = vpack.c.b16 %v148, %v147
    %v159 = vpack.c.b16 %v150, %v149
    %v160 = vpack.c.b16 %v152, %v151
    %169 = vmatprep.subr.bf16.mxu0 0
    %170 = vmatpush1.bf16.msra.mxu0 %v153
    %171 = vmatprep.subr.bf16.mxu0 0
    %172 = vmatpush1.bf16.msra.mxu0 %v154
    %173 = vmatprep.subr.bf16.mxu0 0
    %174 = vmatpush1.bf16.msra.mxu0 %v155
    %175 = vmatprep.subr.bf16.mxu0 0
    %176 = vmatpush1.bf16.msra.mxu0 %v156
    %177 = vmatprep.subr.bf16.mxu0 0
    %178 = vmatpush1.bf16.msra.mxu0 %v157
    %179 = vmatprep.subr.bf16.mxu0 0
    %180 = vmatpush1.bf16.msra.mxu0 %v158
    %181 = vmatprep.subr.bf16.mxu0 0
    %182 = vmatpush1.bf16.msra.mxu0 %v159
    %183 = vmatprep.subr.bf16.mxu0 0
    %184 = vmatpush1.bf16.msra.mxu0 %v160
    %185 = vmatprep.subr.bf16.mxu0 0
    %186 = vmatpush1.bf16.msra.mxu0 0
    %187 = vmatprep.subr.bf16.mxu0 0
    %188 = vmatpush1.bf16.msra.mxu0 0
    %189 = vmatprep.subr.bf16.mxu0 0
    %190 = vmatpush1.bf16.msra.mxu0 0
    %191 = vmatprep.subr.bf16.mxu0 0
    %192 = vmatpush1.bf16.msra.mxu0 0
    %193 = vmatprep.subr.bf16.mxu0 0
    %194 = vmatpush1.bf16.msra.mxu0 0
    %195 = vmatprep.subr.bf16.mxu0 0
    %196 = vmatpush1.bf16.msra.mxu0 0
    %197 = vmatprep.subr.bf16.mxu0 0
    %198 = vmatpush1.bf16.msra.mxu0 0
    %199 = vmatprep.subr.bf16.mxu0 0
    %200 = vmatpush1.bf16.msra.mxu0 0
    %201 = vmatprep.mubr.bf16.mxu0 0
    %202 = vmatmul.mubr.bf16.gmra.mrb[0].mxu0 %v97
    %v203 = vpop.f32.mrb[0].mxu0
    %v204 = vadd.f32 %v119, %v203
    %v205 = vpop.f32.mrb[0].mxu0
    %v206 = vpop.f32.mrb[0].mxu0
    %v207 = vadd.f32 %v119, %v206
    %v208 = vpop.f32.mrb[0].mxu0
    %209 = vdwg.mxu0
    %v210 = vld [vmem:[%s3] sm:$0x1]
    %v211 = vld [vmem:[%s4] sm:$0x1]
    %212 = vadd.xlane.f32.xlu0 %v204
    %v213 = vpop.xlane.xlu0 %212
    %214 = vadd.xlane.f32.xlu0 %v207
    %v215 = vpop.xlane.xlu0 %214
    %v216 = vmul.f32 %v213, 0.03125
    %v217 = vmul.f32 %v215, 0.03125
    %v218 = vmul.f32 %v204, %v204
    %v219 = vmul.f32 %v207, %v207
    %220 = vadd.xlane.f32.xlu0 %v218
    %v221 = vpop.xlane.xlu0 %220
    %222 = vadd.xlane.f32.xlu0 %v219
    %v223 = vpop.xlane.xlu0 %222
    %v224 = vmul.f32 %v221, 0.03125
    %v225 = vmul.f32 %v223, 0.03125
    %v226 = vmul.f32 %v216, %v216
    %v227 = vmul.f32 %v217, %v217
    %v228 = vsub.f32 %v224, %v226
    %v229 = vsub.f32 %v225, %v227
    %v230 = vsub.f32 %v204, %v216
    %v231 = vsub.f32 %v207, %v217
    %v232 = vadd.f32 %v228, 1e-05
    %v233 = vadd.f32 %v229, 1e-05
    %v234 = vrsqrt.pop %v232
    %v235 = vrsqrt.pop %v233
    %v236 = vmul.f32 %v230, %v234
    %v237 = vmul.f32 %v231, %v235
    %v239 = vlaneseq
    %v240 = vshrl.u32 %v239, 7
    %v241 = vsub.s32 0, %v240
    %v242 = vrot.slane %v210, %v241
    %v244 = vmul.f32 %v236, %v242
    %v245 = vmul.f32 %v237, %v242
    %v247 = vlaneseq
    %v248 = vshrl.u32 %v247, 7
    %v249 = vsub.s32 0, %v248
    %v250 = vrot.slane %v211, %v249
    %v252 = vadd.f32 %v244, %v250
    %v253 = vadd.f32 %v245, %v250
    %v254 = vmax.f32 %v252, 0.0
    %v255 = vmax.f32 %v253, 0.0
    %v256 = vpack.c.bf16 %v255, %v254
    %v257 = vld [vmem:[#allocation7] sm:$0xf]
    %v258 = vld [vmem:[#allocation7 + $0x4] sm:$0xf]
    %v259 = vld [vmem:[#allocation7 + $0x8] sm:$0xf]
    %v260 = vld [vmem:[#allocation7 + $0xc] sm:$0xf]
    %v261 = vld [vmem:[#allocation7 + $0x10] sm:$0xf]
    %v262 = vld [vmem:[#allocation7 + $0x14] sm:$0xf]
    %v263 = vld [vmem:[#allocation7 + $0x18] sm:$0xf]
    %v264 = vld [vmem:[#allocation7 + $0x1c] sm:$0xf]
    %v265 = vld [vmem:[#allocation7 + $0x20] sm:$0xf]
    %v266 = vld [vmem:[#allocation7 + $0x24] sm:$0xf]
    %v267 = vld [vmem:[#allocation7 + $0x28] sm:$0xf]
    %v268 = vld [vmem:[#allocation7 + $0x2c] sm:$0xf]
    %v269 = vld [vmem:[#allocation7 + $0x30] sm:$0xf]
    %v270 = vld [vmem:[#allocation7 + $0x34] sm:$0xf]
    %v271 = vld [vmem:[#allocation7 + $0x38] sm:$0xf]
    %v272 = vld [vmem:[#allocation7 + $0x3c] sm:$0xf]
    %v273 = vld [vmem:[%s6] sm:$0x1]
    %v275 = vlaneseq
    %v276 = vshrl.u32 %v275, 7
    %v277 = vsub.s32 0, %v276
    %v278 = vrot.slane %v273, %v277
    %v296 = vunpack.c.l.b16 %v257
    %v297 = vunpack.c.l.b16 %v258
    %v298 = vunpack.c.l.b16 %v259
    %v299 = vunpack.c.l.b16 %v260
    %v300 = vunpack.c.l.b16 %v261
    %v301 = vunpack.c.l.b16 %v262
    %v302 = vunpack.c.l.b16 %v263
    %v303 = vunpack.c.l.b16 %v264
    %v304 = vunpack.c.l.b16 %v265
    %v305 = vunpack.c.l.b16 %v266
    %v306 = vunpack.c.l.b16 %v267
    %v307 = vunpack.c.l.b16 %v268
    %v308 = vunpack.c.l.b16 %v269
    %v309 = vunpack.c.l.b16 %v270
    %v310 = vunpack.c.l.b16 %v271
    %v311 = vunpack.c.l.b16 %v272
    %v312 = vpack.c.b16 %v297, %v296
    %v313 = vpack.c.b16 %v299, %v298
    %v314 = vpack.c.b16 %v301, %v300
    %v315 = vpack.c.b16 %v303, %v302
    %v316 = vpack.c.b16 %v305, %v304
    %v317 = vpack.c.b16 %v307, %v306
    %v318 = vpack.c.b16 %v309, %v308
    %v319 = vpack.c.b16 %v311, %v310
    %328 = vmatprep.subr.bf16.mxu0 0
    %329 = vmatpush1.bf16.msra.mxu0 %v312
    %330 = vmatprep.subr.bf16.mxu0 0
    %331 = vmatpush1.bf16.msra.mxu0 %v313
    %332 = vmatprep.subr.bf16.mxu0 0
    %333 = vmatpush1.bf16.msra.mxu0 %v314
    %334 = vmatprep.subr.bf16.mxu0 0
    %335 = vmatpush1.bf16.msra.mxu0 %v315
    %336 = vmatprep.subr.bf16.mxu0 0
    %337 = vmatpush1.bf16.msra.mxu0 %v316
    %338 = vmatprep.subr.bf16.mxu0 0
    %339 = vmatpush1.bf16.msra.mxu0 %v317
    %340 = vmatprep.subr.bf16.mxu0 0
    %341 = vmatpush1.bf16.msra.mxu0 %v318
    %342 = vmatprep.subr.bf16.mxu0 0
    %343 = vmatpush1.bf16.msra.mxu0 %v319
    %344 = vmatprep.subr.bf16.mxu0 0
    %345 = vmatpush1.bf16.msra.mxu0 0
    %346 = vmatprep.subr.bf16.mxu0 0
    %347 = vmatpush1.bf16.msra.mxu0 0
    %348 = vmatprep.subr.bf16.mxu0 0
    %349 = vmatpush1.bf16.msra.mxu0 0
    %350 = vmatprep.subr.bf16.mxu0 0
    %351 = vmatpush1.bf16.msra.mxu0 0
    %352 = vmatprep.subr.bf16.mxu0 0
    %353 = vmatpush1.bf16.msra.mxu0 0
    %354 = vmatprep.subr.bf16.mxu0 0
    %355 = vmatpush1.bf16.msra.mxu0 0
    %356 = vmatprep.subr.bf16.mxu0 0
    %357 = vmatpush1.bf16.msra.mxu0 0
    %358 = vmatprep.subr.bf16.mxu0 0
    %359 = vmatpush1.bf16.msra.mxu0 0
    %360 = vmatprep.mubr.bf16.mxu0 0
    %361 = vmatmul.mubr.bf16.gmra.mrb[0].mxu0 %v256
    %v362 = vpop.f32.mrb[0].mxu0
    %v363 = vadd.f32 %v278, %v362
    %v364 = vpop.f32.mrb[0].mxu0
    %v365 = vpop.f32.mrb[0].mxu0
    %v366 = vadd.f32 %v278, %v365
    %v367 = vpop.f32.mrb[0].mxu0
    %368 = vdwg.mxu0
    %v369 = vld [vmem:[%s7] sm:$0x1]
    %v370 = vld [vmem:[%s8] sm:$0x1]
    %371 = vadd.xlane.f32.xlu0 %v363
    %v372 = vpop.xlane.xlu0 %371
    %373 = vadd.xlane.f32.xlu0 %v366
    %v374 = vpop.xlane.xlu0 %373
    %v375 = vmul.f32 %v372, 0.03125
    %v376 = vmul.f32 %v374, 0.03125
    %v377 = vmul.f32 %v363, %v363
    %v378 = vmul.f32 %v366, %v366
    %379 = vadd.xlane.f32.xlu0 %v377
    %v380 = vpop.xlane.xlu0 %379
    %381 = vadd.xlane.f32.xlu0 %v378
    %v382 = vpop.xlane.xlu0 %381
    %v383 = vmul.f32 %v380, 0.03125
    %v384 = vmul.f32 %v382, 0.03125
    %v385 = vmul.f32 %v375, %v375
    %v386 = vmul.f32 %v376, %v376
    %v387 = vsub.f32 %v383, %v385
    %v388 = vsub.f32 %v384, %v386
    %v389 = vsub.f32 %v363, %v375
    %v390 = vsub.f32 %v366, %v376
    %v391 = vadd.f32 %v387, 1e-05
    %v392 = vadd.f32 %v388, 1e-05
    %v393 = vrsqrt.pop %v391
    %v394 = vrsqrt.pop %v392
    %v395 = vmul.f32 %v389, %v393
    %v396 = vmul.f32 %v390, %v394
    %v398 = vlaneseq
    %v399 = vshrl.u32 %v398, 7
    %v400 = vsub.s32 0, %v399
    %v401 = vrot.slane %v369, %v400
    %v403 = vmul.f32 %v395, %v401
    %v404 = vmul.f32 %v396, %v401
    %v406 = vlaneseq
    %v407 = vshrl.u32 %v406, 7
    %v408 = vsub.s32 0, %v407
    %v409 = vrot.slane %v370, %v408
    %v411 = vadd.f32 %v403, %v409
    %v412 = vadd.f32 %v404, %v409
    %v413 = vmax.f32 %v411, 0.0
    %v414 = vmax.f32 %v412, 0.0
    %v415 = vadd.f32 %v254, %v413
    %v416 = vadd.f32 %v255, %v414
    %v417 = vpack.c.bf16 %v416, %v415
    %s418 = scalar_lea.vmem [#allocation7], 64
    %v419 = vld [vmem:[%s418] sm:$0xf]
    %v420 = vld [vmem:[%s418 + $0x4] sm:$0xf]
    %v421 = vld [vmem:[%s418 + $0x8] sm:$0xf]
    %v422 = vld [vmem:[%s418 + $0xc] sm:$0xf]
    %v423 = vld [vmem:[%s418 + $0x10] sm:$0xf]
    %v424 = vld [vmem:[%s418 + $0x14] sm:$0xf]
    %v425 = vld [vmem:[%s418 + $0x18] sm:$0xf]
    %v426 = vld [vmem:[%s418 + $0x1c] sm:$0xf]
    %v427 = vld [vmem:[%s418 + $0x20] sm:$0xf]
    %v428 = vld [vmem:[%s418 + $0x24] sm:$0xf]
    %v429 = vld [vmem:[%s418 + $0x28] sm:$0xf]
    %v430 = vld [vmem:[%s418 + $0x2c] sm:$0xf]
    %v431 = vld [vmem:[%s418 + $0x30] sm:$0xf]
    %v432 = vld [vmem:[%s418 + $0x34] sm:$0xf]
    %v433 = vld [vmem:[%s418 + $0x38] sm:$0xf]
    %v434 = vld [vmem:[%s418 + $0x3c] sm:$0xf]
    %s435 = scalar_lea.vmem %s6, 1
    %v436 = vld [vmem:[%s435] sm:$0x1]
    %v438 = vlaneseq
    %v439 = vshrl.u32 %v438, 7
    %v440 = vsub.s32 0, %v439
    %v441 = vrot.slane %v436, %v440
    %v459 = vunpack.c.l.b16 %v419
    %v460 = vunpack.c.l.b16 %v420
    %v461 = vunpack.c.l.b16 %v421
    %v462 = vunpack.c.l.b16 %v422
    %v463 = vunpack.c.l.b16 %v423
    %v464 = vunpack.c.l.b16 %v424
    %v465 = vunpack.c.l.b16 %v425
    %v466 = vunpack.c.l.b16 %v426
    %v467 = vunpack.c.l.b16 %v427
    %v468 = vunpack.c.l.b16 %v428
    %v469 = vunpack.c.l.b16 %v429
    %v470 = vunpack.c.l.b16 %v430
    %v471 = vunpack.c.l.b16 %v431
    %v472 = vunpack.c.l.b16 %v432
    %v473 = vunpack.c.l.b16 %v433
    %v474 = vunpack.c.l.b16 %v434
    %v475 = vpack.c.b16 %v460, %v459
    %v476 = vpack.c.b16 %v462, %v461
    %v477 = vpack.c.b16 %v464, %v463
    %v478 = vpack.c.b16 %v466, %v465
    %v479 = vpack.c.b16 %v468, %v467
    %v480 = vpack.c.b16 %v470, %v469
    %v481 = vpack.c.b16 %v472, %v471
    %v482 = vpack.c.b16 %v474, %v473
    %491 = vmatprep.subr.bf16.mxu0 0
    %492 = vmatpush1.bf16.msra.mxu0 %v475
    %493 = vmatprep.subr.bf16.mxu0 0
    %494 = vmatpush1.bf16.msra.mxu0 %v476
    %495 = vmatprep.subr.bf16.mxu0 0
    %496 = vmatpush1.bf16.msra.mxu0 %v477
    %497 = vmatprep.subr.bf16.mxu0 0
    %498 = vmatpush1.bf16.msra.mxu0 %v478
    %499 = vmatprep.subr.bf16.mxu0 0
    %500 = vmatpush1.bf16.msra.mxu0 %v479
    %501 = vmatprep.subr.bf16.mxu0 0
    %502 = vmatpush1.bf16.msra.mxu0 %v480
    %503 = vmatprep.subr.bf16.mxu0 0
    %504 = vmatpush1.bf16.msra.mxu0 %v481
    %505 = vmatprep.subr.bf16.mxu0 0
    %506 = vmatpush1.bf16.msra.mxu0 %v482
    %507 = vmatprep.subr.bf16.mxu0 0
    %508 = vmatpush1.bf16.msra.mxu0 0
    %509 = vmatprep.subr.bf16.mxu0 0
    %510 = vmatpush1.bf16.msra.mxu0 0
    %511 = vmatprep.subr.bf16.mxu0 0
    %512 = vmatpush1.bf16.msra.mxu0 0
    %513 = vmatprep.subr.bf16.mxu0 0
    %514 = vmatpush1.bf16.msra.mxu0 0
    %515 = vmatprep.subr.bf16.mxu0 0
    %516 = vmatpush1.bf16.msra.mxu0 0
    %517 = vmatprep.subr.bf16.mxu0 0
    %518 = vmatpush1.bf16.msra.mxu0 0
    %519 = vmatprep.subr.bf16.mxu0 0
    %520 = vmatpush1.bf16.msra.mxu0 0
    %521 = vmatprep.subr.bf16.mxu0 0
    %522 = vmatpush1.bf16.msra.mxu0 0
    %523 = vmatprep.mubr.bf16.mxu0 0
    %524 = vmatmul.mubr.bf16.gmra.mrb[0].mxu0 %v417
    %v525 = vpop.f32.mrb[0].mxu0
    %v526 = vadd.f32 %v441, %v525
    %v527 = vpop.f32.mrb[0].mxu0
    %v528 = vpop.f32.mrb[0].mxu0
    %v529 = vadd.f32 %v441, %v528
    %v530 = vpop.f32.mrb[0].mxu0
    %531 = vdwg.mxu0
    %s532 = scalar_lea.vmem %s7, 1
    %v533 = vld [vmem:[%s532] sm:$0x1]
    %s534 = scalar_lea.vmem %s8, 1
    %v535 = vld [vmem:[%s534] sm:$0x1]
    %536 = vadd.xlane.f32.xlu0 %v526
    %v537 = vpop.xlane.xlu0 %536
    %538 = vadd.xlane.f32.xlu0 %v529
    %v539 = vpop.xlane.xlu0 %538
    %v540 = vmul.f32 %v537, 0.03125
    %v541 = vmul.f32 %v539, 0.03125
    %v542 = vmul.f32 %v526, %v526
    %v543 = vmul.f32 %v529, %v529
    %544 = vadd.xlane.f32.xlu0 %v542
    %v545 = vpop.xlane.xlu0 %544
    %546 = vadd.xlane.f32.xlu0 %v543
    %v547 = vpop.xlane.xlu0 %546
    %v548 = vmul.f32 %v545, 0.03125
    %v549 = vmul.f32 %v547, 0.03125
    %v550 = vmul.f32 %v540, %v540
    %v551 = vmul.f32 %v541, %v541
    %v552 = vsub.f32 %v548, %v550
    %v553 = vsub.f32 %v549, %v551
    %v554 = vsub.f32 %v526, %v540
    %v555 = vsub.f32 %v529, %v541
    %v556 = vadd.f32 %v552, 1e-05
    %v557 = vadd.f32 %v553, 1e-05
    %v558 = vrsqrt.pop %v556
    %v559 = vrsqrt.pop %v557
    %v560 = vmul.f32 %v554, %v558
    %v561 = vmul.f32 %v555, %v559
    %v563 = vlaneseq
    %v564 = vshrl.u32 %v563, 7
    %v565 = vsub.s32 0, %v564
    %v566 = vrot.slane %v533, %v565
    %v568 = vmul.f32 %v560, %v566
    %v569 = vmul.f32 %v561, %v566
    %v571 = vlaneseq
    %v572 = vshrl.u32 %v571, 7
    %v573 = vsub.s32 0, %v572
    %v574 = vrot.slane %v535, %v573
    %v576 = vadd.f32 %v568, %v574
    %v577 = vadd.f32 %v569, %v574
    %v578 = vmax.f32 %v576, 0.0
    %v579 = vmax.f32 %v577, 0.0
    %v580 = vadd.f32 %v415, %v578
    %v581 = vadd.f32 %v416, %v579
    %v582 = vpack.c.bf16 %v581, %v580
    %v583 = vld [vmem:[#allocation8] sm:$0xf]
    %v584 = vld [vmem:[#allocation8 + $0x4] sm:$0xf]
    %v585 = vld [vmem:[#allocation8 + $0x8] sm:$0xf]
    %v586 = vld [vmem:[#allocation8 + $0xc] sm:$0xf]
    %v587 = vld [vmem:[#allocation8 + $0x10] sm:$0xf]
    %v588 = vld [vmem:[#allocation8 + $0x14] sm:$0xf]
    %v589 = vld [vmem:[#allocation8 + $0x18] sm:$0xf]
    %v590 = vld [vmem:[#allocation8 + $0x1c] sm:$0xf]
    %v591 = vld [vmem:[#allocation8 + $0x20] sm:$0xf]
    %v592 = vld [vmem:[#allocation8 + $0x24] sm:$0xf]
    %v593 = vld [vmem:[#allocation8 + $0x28] sm:$0xf]
    %v594 = vld [vmem:[#allocation8 + $0x2c] sm:$0xf]
    %v595 = vld [vmem:[#allocation8 + $0x30] sm:$0xf]
    %v596 = vld [vmem:[#allocation8 + $0x34] sm:$0xf]
    %v597 = vld [vmem:[#allocation8 + $0x38] sm:$0xf]
    %v598 = vld [vmem:[#allocation8 + $0x3c] sm:$0xf]
    %v599 = vld [vmem:[%s10] sm:$0x1]
    %v601 = vlaneseq
    %v602 = vshrl.u32 %v601, 7
    %v603 = vsub.s32 0, %v602
    %v604 = vrot.slane %v599, %v603
    %v622 = vunpack.c.l.b16 %v583
    %v623 = vunpack.c.l.b16 %v584
    %v624 = vunpack.c.l.b16 %v585
    %v625 = vunpack.c.l.b16 %v586
    %v626 = vunpack.c.l.b16 %v587
    %v627 = vunpack.c.l.b16 %v588
    %v628 = vunpack.c.l.b16 %v589
    %v629 = vunpack.c.l.b16 %v590
    %v630 = vunpack.c.l.b16 %v591
    %v631 = vunpack.c.l.b16 %v592
    %v632 = vunpack.c.l.b16 %v593
    %v633 = vunpack.c.l.b16 %v594
    %v634 = vunpack.c.l.b16 %v595
    %v635 = vunpack.c.l.b16 %v596
    %v636 = vunpack.c.l.b16 %v597
    %v637 = vunpack.c.l.b16 %v598
    %v638 = vpack.c.b16 %v623, %v622
    %v639 = vpack.c.b16 %v625, %v624
    %v640 = vpack.c.b16 %v627, %v626
    %v641 = vpack.c.b16 %v629, %v628
    %v642 = vpack.c.b16 %v631, %v630
    %v643 = vpack.c.b16 %v633, %v632
    %v644 = vpack.c.b16 %v635, %v634
    %v645 = vpack.c.b16 %v637, %v636
    %654 = vmatprep.subr.bf16.mxu0 0
    %655 = vmatpush1.bf16.msra.mxu0 %v638
    %656 = vmatprep.subr.bf16.mxu0 0
    %657 = vmatpush1.bf16.msra.mxu0 %v639
    %658 = vmatprep.subr.bf16.mxu0 0
    %659 = vmatpush1.bf16.msra.mxu0 %v640
    %660 = vmatprep.subr.bf16.mxu0 0
    %661 = vmatpush1.bf16.msra.mxu0 %v641
    %662 = vmatprep.subr.bf16.mxu0 0
    %663 = vmatpush1.bf16.msra.mxu0 %v642
    %664 = vmatprep.subr.bf16.mxu0 0
    %665 = vmatpush1.bf16.msra.mxu0 %v643
    %666 = vmatprep.subr.bf16.mxu0 0
    %667 = vmatpush1.bf16.msra.mxu0 %v644
    %668 = vmatprep.subr.bf16.mxu0 0
    %669 = vmatpush1.bf16.msra.mxu0 %v645
    %670 = vmatprep.subr.bf16.mxu0 0
    %671 = vmatpush1.bf16.msra.mxu0 0
    %672 = vmatprep.subr.bf16.mxu0 0
    %673 = vmatpush1.bf16.msra.mxu0 0
    %674 = vmatprep.subr.bf16.mxu0 0
    %675 = vmatpush1.bf16.msra.mxu0 0
    %676 = vmatprep.subr.bf16.mxu0 0
    %677 = vmatpush1.bf16.msra.mxu0 0
    %678 = vmatprep.subr.bf16.mxu0 0
    %679 = vmatpush1.bf16.msra.mxu0 0
    %680 = vmatprep.subr.bf16.mxu0 0
    %681 = vmatpush1.bf16.msra.mxu0 0
    %682 = vmatprep.subr.bf16.mxu0 0
    %683 = vmatpush1.bf16.msra.mxu0 0
    %684 = vmatprep.subr.bf16.mxu0 0
    %685 = vmatpush1.bf16.msra.mxu0 0
    %686 = vmatprep.mubr.bf16.mxu0 0
    %687 = vmatmul.mubr.bf16.gmra.mrb[0].mxu0 %v582
    %v688 = vpop.f32.mrb[0].mxu0
    %v689 = vadd.f32 %v604, %v688
    %v690 = vpop.f32.mrb[0].mxu0
    %v691 = vpop.f32.mrb[0].mxu0
    %v692 = vadd.f32 %v604, %v691
    %v693 = vpop.f32.mrb[0].mxu0
    %694 = vdwg.mxu0
    %695 = vst [vmem:[#allocation10] sm:$0xff] %v689
    %696 = vst [vmem:[#allocation10 + $0x8] sm:$0xff] %v692
    // Predicated region
    $region62: #{tpu_custom_call.1} parent=1 // pred_check
      _
    $region63: #{tpu_custom_call.1} parent=1 // pred_check_branch
      %698 = sbr.rel (0) target = $region65
    $region64: #{tpu_custom_call.1} parent=1 // pred_region
      %s700 = ssub.s32 256, 256
      %701 = vsyncadd [#allocation4], %s700
      %s702 = sshll.u32 [#allocation10], 4
      %s703 = int_to_ptr.vmem [resolvable:$true] %s702
      %708 = dma.vmem_to_hbm [thread:$0]  %s703, 256, %s11, [#allocation4], 128, 128, 8
    $region65: #{tpu_custom_call.1} parent=1 // pred_fallthru
      _
    // Predicated region
    $region66: #{tpu_custom_call.1} parent=1 // pred_check
      _
    $region67: #{tpu_custom_call.1} parent=1 // pred_check_branch
      %710 = sbr.rel (0) target = $region69
    $region68: #{tpu_custom_call.1} parent=1 // pred_region
      %711 = dma.done [#allocation4], 256
    $region69: #{tpu_custom_call.1} parent=1 // pred_fallthru
      _
    %712 = vsyncpa [#allocation3], 1
    %713 = vsyncpa [#allocation6], 1
    %714 = vsyncpa [#allocation9], 1
    %715 = vsyncpa [#allocation4], 1

</llo_original>
